<compile_context>
chip_gen: v7x
topology: tpu7x:2x2x1
jax: 0.10.0
libtpu: 0.0.40
codegen_flags: <defaults>
</compile_context>

<pallas_src>
import functools

import jax
import jax.numpy as jnp
from jax.experimental import pallas as pl
from jax.experimental.pallas import tpu as pltpu


# ----------------------------------------------------------------------------
# helpers: VMEM-aware tile sizing
# ----------------------------------------------------------------------------
def _vmem_capacity_bytes() -> int:
    """Physical VMEM per TensorCore; conservative fallback (v7x = 64 MiB)."""
    try:
        cap = int(pltpu.get_tpu_info().vmem_capacity_bytes)
        if cap > 0:
            return cap
    except Exception:
        pass
    return 64 * 1024 * 1024


def _padded_vmem_bytes(block_shape, itemsize) -> int:
    """VMEM footprint of a block: last two dims pad to (sublane, 128) tiles."""
    sub = {1: 32, 2: 16, 4: 8}.get(itemsize, 8)
    lead = 1
    for d in block_shape[:-2]:
        lead *= int(d)
    rows = -(-int(block_shape[-2]) // sub) * sub
    cols = -(-int(block_shape[-1]) // 128) * 128
    return lead * rows * cols * itemsize


def _divisors_desc(n):
    return [d for d in range(n, 0, -1) if n % d == 0]


def _choose_tiles(N, C, budget, unit_bytes_fn):
    """Pick (nb, ct): as many images / channels per step as fit the budget.

    unit_bytes_fn(ct) = padded in+out bytes for one image at channel tile ct.
    Double buffering (input + output) costs 2x the per-step working set.
    """
    for ct in _divisors_desc(C):
        unit = unit_bytes_fn(ct)
        if 2 * unit <= budget:
            nb_cap = max(1, budget // (2 * unit))
            for nb in _divisors_desc(N):
                if nb <= nb_cap:
                    return nb, ct
            return 1, ct
    # TODO(synk): for feature maps too large even at ct=1, add a spatial (H)
    # tiling axis; not needed for the shapes exercised here.
    return 1, 1


# ----------------------------------------------------------------------------
# kernels
# ----------------------------------------------------------------------------
def _copy_patch_kernel(x_ref, o_ref):
    # Fast (lane-aligned) path: the (i, j) spatial split is expressed entirely
    # in the BlockSpec index_maps, i.e. it is performed by the DMA engine.
    # The body is a single dense full-block copy -- no VPU/XLU shuffle work.
    o_ref[:, 0] = x_ref[...]


def _split_image_kernel(x_ref, o_ref, *, M, bh, bw):
    # General path (bw not a multiple of 128): the (8,128) BlockSpec rule
    # forbids tiling W by bw, so the split happens in-kernel with *static*
    # slice offsets over a large (multi-image) tile.
    # TODO(synk): for very large M fold (i, j) into the grid instead of
    # unrolling M*M copies here.
    for i in range(M):
        for j in range(M):
            o_ref[:, i * M + j] = x_ref[:, :, i * bh:(i + 1) * bh,
                                        j * bw:(j + 1) * bw]


# ----------------------------------------------------------------------------
# wrapper
# ----------------------------------------------------------------------------
def random_patch(x, M):
    """Equivalent of Randompatch(M)(x) for NCHW input x."""
    N, C, H, W = x.shape
    assert H % M == 0 and W % M == 0, "spatial dims must be divisible by M"
    bh, bw = H // M, W // M

    itemsize = jnp.dtype(x.dtype).itemsize
    sub = {1: 32, 2: 16, 4: 8}.get(itemsize, 8)

    cap = _vmem_capacity_bytes()
    budget = cap // 3                      # double-buffered in+out working set
    vmem_limit = int(cap * 3 // 4)         # raise the default scoped limit

    out_shape = jax.ShapeDtypeStruct((N, M * M, C, bh, bw), x.dtype)

    lane_aligned = (bw % 128 == 0) and (bh % sub == 0)

    if lane_aligned:
        # Pure-DMA formulation: grid over (batch, channel, grid-row, grid-col);
        # every block is read/written exactly once -> all axes "parallel".
        nb, ct = _choose_tiles(
            N, C, budget,
            lambda ct: (_padded_vmem_bytes((1, ct, bh, bw), itemsize)
                        + _padded_vmem_bytes((1, 1, ct, bh, bw), itemsize)))
        grid = (N // nb, C // ct, M, M)
        in_specs = [pl.BlockSpec((nb, ct, bh, bw),
                                 lambda n, c, i, j: (n, c, i, j))]
        out_specs = pl.BlockSpec((nb, 1, ct, bh, bw),
                                 lambda n, c, i, j: (n, i * M + j, c, 0, 0))
        kernel = _copy_patch_kernel
        dims = ("parallel",) * 4
    else:
        # General path: whole images per step (trailing block dims equal the
        # full array dims, so the (8,128) rule is satisfied for any bh/bw).
        nb, ct = _choose_tiles(
            N, C, budget,
            lambda ct: (_padded_vmem_bytes((1, ct, H, W), itemsize)
                        + _padded_vmem_bytes((1, M * M, ct, bh, bw), itemsize)))
        grid = (N // nb, C // ct)
        in_specs = [pl.BlockSpec((nb, ct, H, W),
                                 lambda n, c: (n, c, 0, 0))]
        out_specs = pl.BlockSpec((nb, M * M, ct, bh, bw),
                                 lambda n, c: (n, 0, c, 0, 0))
        kernel = functools.partial(_split_image_kernel, M=M, bh=bh, bw=bw)
        dims = ("parallel",) * 2

    return pl.pallas_call(
        kernel,
        out_shape=out_shape,
        grid=grid,
        in_specs=in_specs,
        out_specs=out_specs,
        compiler_params=pltpu.CompilerParams(
            dimension_semantics=dims,
            vmem_limit_bytes=vmem_limit,
        ),
    )(x)


# ----------------------------------------------------------------------------
# pure-JAX reference (what Imgblock.TensorBlock does)
# ----------------------------------------------------------------------------
def _reference(x, M):
    N, C, H, W = x.shape
    bh, bw = H // M, W // M
    blocks = []
    for i in range(M):
        for j in range(M):
            blocks.append(x[:, :, i * bh:(i + 1) * bh, j * bw:(j + 1) * bw])
    return jnp.stack(blocks, axis=1)  # (N, M*M, C, bh, bw)


if __name__ == "__main__":
    M = 2
    key = jax.random.PRNGKey(0)
    k1, k2 = jax.random.split(key)

    # Case 1: small image, bw = 8 (< 128) -> general in-kernel-split path.
    x1 = jax.random.normal(k1, (2, 4, 16, 16), dtype=jnp.float32)
    out1 = jax.block_until_ready(random_patch(x1, M))
    ref1 = _reference(x1, M)
    assert out1.shape == (2, M * M, 4, 8, 8), out1.shape
    assert bool(jnp.array_equal(out1, ref1)), "mismatch (general path)"

    # Case 2: lane-aligned width, bw = 128 -> pure-DMA BlockSpec path.
    x2 = jax.random.normal(k2, (2, 4, 16, 256), dtype=jnp.float32)
    out2 = jax.block_until_ready(random_patch(x2, M))
    ref2 = _reference(x2, M)
    assert out2.shape == (2, M * M, 4, 8, 128), out2.shape
    assert bool(jnp.array_equal(out2, ref2)), "mismatch (DMA-only path)"

    print("KERNEL_OK")
</pallas_src>

<mosaic_0001>
module attributes {stable_mosaic.version = 11 : i64} {
  func.func @_split_image_kernel(%arg0: i32, %arg1: i32, %arg2: memref<2x4x16x16xf32, #tpu.memory_space<vmem>>, %arg3: memref<2x4x4x8x8xf32, #tpu.memory_space<vmem>>) attributes {dimension_semantics = [#tpu.dimension_semantics<parallel>, #tpu.dimension_semantics<parallel>], iteration_bounds = array<i64: 1, 1>, scalar_prefetch = 0 : i64, scratch_operands = 0 : i64, tpu.core_type = #tpu.core_type<tc>, window_params = [{transform_indices = @transform_0, window_bounds = array<i64: 2, 4, 16, 16>}, {transform_indices = @transform_1, window_bounds = array<i64: 2, 4, 4, 8, 8>}]} {
    %c0 = arith.constant 0 : index
    %c0_0 = arith.constant 0 : index
    %c0_1 = arith.constant 0 : index
    %c0_2 = arith.constant 0 : index
    %0 = vector.load %arg2[%c0, %c0_0, %c0_1, %c0_2] : memref<2x4x16x16xf32, #tpu.memory_space<vmem>>, vector<2x4x8x8xf32>
    %c0_3 = arith.constant 0 : index
    %c0_4 = arith.constant 0 : index
    %c0_5 = arith.constant 0 : index
    %c0_6 = arith.constant 0 : index
    %c0_7 = arith.constant 0 : index
    %1 = vector.load %arg3[%c0_3, %c0_4, %c0_5, %c0_6, %c0_7] : memref<2x4x4x8x8xf32, #tpu.memory_space<vmem>>, vector<2x1x4x8x8xf32>
    %2 = vector.shape_cast %1 : vector<2x1x4x8x8xf32> to vector<2x4x8x8xf32>
    %3 = vector.shape_cast %0 : vector<2x4x8x8xf32> to vector<2x1x4x8x8xf32>
    tpu.vector_store %arg3[%c0_3, %c0_4, %c0_5, %c0_6, %c0_7], %3 {strides = array<i32>} : memref<2x4x4x8x8xf32, #tpu.memory_space<vmem>>, vector<2x1x4x8x8xf32>,
    %c0_8 = arith.constant 0 : index
    %c0_9 = arith.constant 0 : index
    %c0_10 = arith.constant 0 : index
    %c8 = arith.constant 8 : index
    %4 = vector.load %arg2[%c0_8, %c0_9, %c0_10, %c8] : memref<2x4x16x16xf32, #tpu.memory_space<vmem>>, vector<2x4x8x8xf32>
    %c0_11 = arith.constant 0 : index
    %c1 = arith.constant 1 : index
    %c0_12 = arith.constant 0 : index
    %c0_13 = arith.constant 0 : index
    %c0_14 = arith.constant 0 : index
    %5 = vector.load %arg3[%c0_11, %c1, %c0_12, %c0_13, %c0_14] : memref<2x4x4x8x8xf32, #tpu.memory_space<vmem>>, vector<2x1x4x8x8xf32>
    %6 = vector.shape_cast %5 : vector<2x1x4x8x8xf32> to vector<2x4x8x8xf32>
    %7 = vector.shape_cast %4 : vector<2x4x8x8xf32> to vector<2x1x4x8x8xf32>
    tpu.vector_store %arg3[%c0_11, %c1, %c0_12, %c0_13, %c0_14], %7 {strides = array<i32>} : memref<2x4x4x8x8xf32, #tpu.memory_space<vmem>>, vector<2x1x4x8x8xf32>,
    %c0_15 = arith.constant 0 : index
    %c0_16 = arith.constant 0 : index
    %c8_17 = arith.constant 8 : index
    %c0_18 = arith.constant 0 : index
    %8 = vector.load %arg2[%c0_15, %c0_16, %c8_17, %c0_18] : memref<2x4x16x16xf32, #tpu.memory_space<vmem>>, vector<2x4x8x8xf32>
    %c0_19 = arith.constant 0 : index
    %c2 = arith.constant 2 : index
    %c0_20 = arith.constant 0 : index
    %c0_21 = arith.constant 0 : index
    %c0_22 = arith.constant 0 : index
    %9 = vector.load %arg3[%c0_19, %c2, %c0_20, %c0_21, %c0_22] : memref<2x4x4x8x8xf32, #tpu.memory_space<vmem>>, vector<2x1x4x8x8xf32>
    %10 = vector.shape_cast %9 : vector<2x1x4x8x8xf32> to vector<2x4x8x8xf32>
    %11 = vector.shape_cast %8 : vector<2x4x8x8xf32> to vector<2x1x4x8x8xf32>
    tpu.vector_store %arg3[%c0_19, %c2, %c0_20, %c0_21, %c0_22], %11 {strides = array<i32>} : memref<2x4x4x8x8xf32, #tpu.memory_space<vmem>>, vector<2x1x4x8x8xf32>,
    %c0_23 = arith.constant 0 : index
    %c0_24 = arith.constant 0 : index
    %c8_25 = arith.constant 8 : index
    %c8_26 = arith.constant 8 : index
    %12 = vector.load %arg2[%c0_23, %c0_24, %c8_25, %c8_26] : memref<2x4x16x16xf32, #tpu.memory_space<vmem>>, vector<2x4x8x8xf32>
    %c0_27 = arith.constant 0 : index
    %c3 = arith.constant 3 : index
    %c0_28 = arith.constant 0 : index
    %c0_29 = arith.constant 0 : index
    %c0_30 = arith.constant 0 : index
    %13 = vector.load %arg3[%c0_27, %c3, %c0_28, %c0_29, %c0_30] : memref<2x4x4x8x8xf32, #tpu.memory_space<vmem>>, vector<2x1x4x8x8xf32>
    %14 = vector.shape_cast %13 : vector<2x1x4x8x8xf32> to vector<2x4x8x8xf32>
    %15 = vector.shape_cast %12 : vector<2x4x8x8xf32> to vector<2x1x4x8x8xf32>
    tpu.vector_store %arg3[%c0_27, %c3, %c0_28, %c0_29, %c0_30], %15 {strides = array<i32>} : memref<2x4x4x8x8xf32, #tpu.memory_space<vmem>>, vector<2x1x4x8x8xf32>,
    return
  }
  func.func @transform_0(%arg0: i32, %arg1: i32) -> (i32, i32, i32, i32) {
    %c0_i32 = arith.constant 0 : i32
    %c0_i32_0 = arith.constant 0 : i32
    %c0_i32_1 = arith.constant 0 : i32
    return %arg0, %arg1, %c0_i32, %c0_i32_0 : i32, i32, i32, i32
  }
  func.func @transform_1(%arg0: i32, %arg1: i32) -> (i32, i32, i32, i32, i32) {
    %c0_i32 = arith.constant 0 : i32
    %c0_i32_0 = arith.constant 0 : i32
    %c0_i32_1 = arith.constant 0 : i32
    %c0_i32_2 = arith.constant 0 : i32
    return %arg0, %c0_i32, %arg1, %c0_i32_0, %c0_i32_1 : i32, i32, i32, i32, i32
  }
}

</mosaic_0001>

<llo_original>
// kernel: tpu_custom_call.1
$region0: #{tpu_custom_call.1}
  #allocation0 [shape = 'u32[]', space=smem, size = 0x4, offset = 0x4, fixed_abs, tag = 'smem constant byte address 0x4 - core index']
  #allocation1 [shape = 'u32[144,128]{1,0:T(1,128)}', space=vmem, size = 0x12000, scoped, tag = 'internal scratch']
  %s0 = inlined_call_operand.hbm [shape: f32[2,4,16,16], index: 0, kind: input, shape index: {}]
  %s1 = inlined_call_operand.hbm [shape: f32[2,4,4,8,8], index: 1, kind: output, shape index: {}]
  %s2 = sld [smem:[#allocation0]]
  $region18: #{tpu_custom_call.1} parent=0
    _
  %s4 = ssub.s32 1, %s2
  %s5 = scalar_select 0, %s4, %s2
  $region1: #{tpu_custom_call.1} parent=0
    #allocation2 [shape = 'u8[65536]{0}', space=vmem, size = 0x10000, scoped, tag = 'input window, operand 0, single buffered']
    #allocation3 [shape = 's32[1]{0}', space=sflag, size = 0x4, scoped, tag = 'scoped memory for tpu_custom_call.1']
    #allocation4 [shape = 's32[1]{0}', space=sflag, size = 0x4, scoped, tag = 'scoped memory for tpu_custom_call.1']
    #allocation5 [shape = 'u8[131072]{0}', space=vmem, size = 0x20000, scoped, tag = 'output window, operand 0, single buffered']
    %6 = vsyncpa [#allocation3], 0
    %7 = vsyncpa [#allocation4], 0
    // Predicated region
    $region2: #{tpu_custom_call.1} parent=1 // pred_check
      _
    $region3: #{tpu_custom_call.1} parent=1 // pred_check_branch
      %9 = sbr.rel (0) target = $region5
    $region4: #{tpu_custom_call.1} parent=1 // pred_region
      %s11 = ssub.s32 2048, 2048
      %12 = vsyncadd [#allocation3], %s11
      %s13 = sshll.u32 [#allocation2], 4
      %s14 = int_to_ptr.vmem [resolvable:$true] %s13
      %19 = dma.hbm_to_vmem [thread:$0]  %s0, 2048, %s14, [#allocation3], 128, 128, 8
    $region5: #{tpu_custom_call.1} parent=1 // pred_fallthru
      _
    // Predicated region
    $region6: #{tpu_custom_call.1} parent=1 // pred_check
      _
    $region7: #{tpu_custom_call.1} parent=1 // pred_check_branch
      %21 = sbr.rel (0) target = $region9
    $region8: #{tpu_custom_call.1} parent=1 // pred_region
      %22 = dma.done [#allocation3], 2048
    $region9: #{tpu_custom_call.1} parent=1 // pred_fallthru
      _
    %v23 = vld [vmem:[#allocation2] sm:$0xff]
    %v24 = vld [vmem:[#allocation2 + $0x10] sm:$0xff]
    %v25 = vld [vmem:[#allocation2 + $0x20] sm:$0xff]
    %v26 = vld [vmem:[#allocation2 + $0x30] sm:$0xff]
    %v27 = vld [vmem:[#allocation2 + $0x40] sm:$0xff]
    %v28 = vld [vmem:[#allocation2 + $0x50] sm:$0xff]
    %v29 = vld [vmem:[#allocation2 + $0x60] sm:$0xff]
    %v30 = vld [vmem:[#allocation2 + $0x70] sm:$0xff]
    %vm31 = vcmask 64512
    %32 = vst.msk [vmem:[#allocation5] sm:$0xff] %vm31, %v23
    %33 = vst.msk [vmem:[#allocation5 + $0x8] sm:$0xff] %vm31, %v24
    %34 = vst.msk [vmem:[#allocation5 + $0x10] sm:$0xff] %vm31, %v25
    %35 = vst.msk [vmem:[#allocation5 + $0x18] sm:$0xff] %vm31, %v26
    %36 = vst.msk [vmem:[#allocation5 + $0x80] sm:$0xff] %vm31, %v27
    %37 = vst.msk [vmem:[#allocation5 + $0x88] sm:$0xff] %vm31, %v28
    %38 = vst.msk [vmem:[#allocation5 + $0x90] sm:$0xff] %vm31, %v29
    %39 = vst.msk [vmem:[#allocation5 + $0x98] sm:$0xff] %vm31, %v30
    %v40 = vld [vmem:[#allocation2] sm:$0xff]
    %v41 = vld [vmem:[#allocation2 + $0x10] sm:$0xff]
    %v42 = vld [vmem:[#allocation2 + $0x20] sm:$0xff]
    %v43 = vld [vmem:[#allocation2 + $0x30] sm:$0xff]
    %v44 = vld [vmem:[#allocation2 + $0x40] sm:$0xff]
    %v45 = vld [vmem:[#allocation2 + $0x50] sm:$0xff]
    %v46 = vld [vmem:[#allocation2 + $0x60] sm:$0xff]
    %v47 = vld [vmem:[#allocation2 + $0x70] sm:$0xff]
    %56 = vrot.lane.b32.xlu0 %v40, 120
    %v57 = vpop.permute.xlu0 %56
    %58 = vrot.lane.b32.xlu0 %v41, 120
    %v59 = vpop.permute.xlu0 %58
    %60 = vrot.lane.b32.xlu0 %v42, 120
    %v61 = vpop.permute.xlu0 %60
    %62 = vrot.lane.b32.xlu0 %v43, 120
    %v63 = vpop.permute.xlu0 %62
    %64 = vrot.lane.b32.xlu0 %v44, 120
    %v65 = vpop.permute.xlu0 %64
    %66 = vrot.lane.b32.xlu0 %v45, 120
    %v67 = vpop.permute.xlu0 %66
    %68 = vrot.lane.b32.xlu0 %v46, 120
    %v69 = vpop.permute.xlu0 %68
    %70 = vrot.lane.b32.xlu0 %v47, 120
    %v71 = vpop.permute.xlu0 %70
    %s80 = scalar_lea.vmem [#allocation5], 32
    %81 = vst.msk [vmem:[%s80] sm:$0xff] %vm31, %v57
    %82 = vst.msk [vmem:[%s80 + $0x8] sm:$0xff] %vm31, %v59
    %83 = vst.msk [vmem:[%s80 + $0x10] sm:$0xff] %vm31, %v61
    %84 = vst.msk [vmem:[%s80 + $0x18] sm:$0xff] %vm31, %v63
    %85 = vst.msk [vmem:[%s80 + $0x80] sm:$0xff] %vm31, %v65
    %86 = vst.msk [vmem:[%s80 + $0x88] sm:$0xff] %vm31, %v67
    %87 = vst.msk [vmem:[%s80 + $0x90] sm:$0xff] %vm31, %v69
    %88 = vst.msk [vmem:[%s80 + $0x98] sm:$0xff] %vm31, %v71
    %v89 = vld [vmem:[#allocation2 + $0x8] sm:$0xff]
    %v90 = vld [vmem:[#allocation2 + $0x18] sm:$0xff]
    %v91 = vld [vmem:[#allocation2 + $0x28] sm:$0xff]
    %v92 = vld [vmem:[#allocation2 + $0x38] sm:$0xff]
    %v93 = vld [vmem:[#allocation2 + $0x48] sm:$0xff]
    %v94 = vld [vmem:[#allocation2 + $0x58] sm:$0xff]
    %v95 = vld [vmem:[#allocation2 + $0x68] sm:$0xff]
    %v96 = vld [vmem:[#allocation2 + $0x78] sm:$0xff]
    %s97 = scalar_lea.vmem [#allocation5], 64
    %98 = vst.msk [vmem:[%s97] sm:$0xff] %vm31, %v89
    %99 = vst.msk [vmem:[%s97 + $0x8] sm:$0xff] %vm31, %v90
    %100 = vst.msk [vmem:[%s97 + $0x10] sm:$0xff] %vm31, %v91
    %101 = vst.msk [vmem:[%s97 + $0x18] sm:$0xff] %vm31, %v92
    %102 = vst.msk [vmem:[%s97 + $0x80] sm:$0xff] %vm31, %v93
    %103 = vst.msk [vmem:[%s97 + $0x88] sm:$0xff] %vm31, %v94
    %104 = vst.msk [vmem:[%s97 + $0x90] sm:$0xff] %vm31, %v95
    %105 = vst.msk [vmem:[%s97 + $0x98] sm:$0xff] %vm31, %v96
    %v106 = vld [vmem:[#allocation2 + $0x8] sm:$0xff]
    %v107 = vld [vmem:[#allocation2 + $0x18] sm:$0xff]
    %v108 = vld [vmem:[#allocation2 + $0x28] sm:$0xff]
    %v109 = vld [vmem:[#allocation2 + $0x38] sm:$0xff]
    %v110 = vld [vmem:[#allocation2 + $0x48] sm:$0xff]
    %v111 = vld [vmem:[#allocation2 + $0x58] sm:$0xff]
    %v112 = vld [vmem:[#allocation2 + $0x68] sm:$0xff]
    %v113 = vld [vmem:[#allocation2 + $0x78] sm:$0xff]
    %122 = vrot.lane.b32.xlu0 %v106, 120
    %v123 = vpop.permute.xlu0 %122
    %124 = vrot.lane.b32.xlu0 %v107, 120
    %v125 = vpop.permute.xlu0 %124
    %126 = vrot.lane.b32.xlu0 %v108, 120
    %v127 = vpop.permute.xlu0 %126
    %128 = vrot.lane.b32.xlu0 %v109, 120
    %v129 = vpop.permute.xlu0 %128
    %130 = vrot.lane.b32.xlu0 %v110, 120
    %v131 = vpop.permute.xlu0 %130
    %132 = vrot.lane.b32.xlu0 %v111, 120
    %v133 = vpop.permute.xlu0 %132
    %134 = vrot.lane.b32.xlu0 %v112, 120
    %v135 = vpop.permute.xlu0 %134
    %136 = vrot.lane.b32.xlu0 %v113, 120
    %v137 = vpop.permute.xlu0 %136
    %s146 = scalar_lea.vmem [#allocation5], 96
    %147 = vst.msk [vmem:[%s146] sm:$0xff] %vm31, %v123
    %148 = vst.msk [vmem:[%s146 + $0x8] sm:$0xff] %vm31, %v125
    %149 = vst.msk [vmem:[%s146 + $0x10] sm:$0xff] %vm31, %v127
    %150 = vst.msk [vmem:[%s146 + $0x18] sm:$0xff] %vm31, %v129
    %151 = vst.msk [vmem:[%s146 + $0x80] sm:$0xff] %vm31, %v131
    %152 = vst.msk [vmem:[%s146 + $0x88] sm:$0xff] %vm31, %v133
    %153 = vst.msk [vmem:[%s146 + $0x90] sm:$0xff] %vm31, %v135
    %154 = vst.msk [vmem:[%s146 + $0x98] sm:$0xff] %vm31, %v137
    // Predicated region
    $region10: #{tpu_custom_call.1} parent=1 // pred_check
      _
    $region11: #{tpu_custom_call.1} parent=1 // pred_check_branch
      %156 = sbr.rel (0) target = $region13
    $region12: #{tpu_custom_call.1} parent=1 // pred_region
      %s158 = ssub.s32 4096, 4096
      %159 = vsyncadd [#allocation4], %s158
      %s160 = sshll.u32 [#allocation5], 4
      %s161 = int_to_ptr.vmem [resolvable:$true] %s160
      %166 = dma.vmem_to_hbm [thread:$0]  %s161, 4096, %s1, [#allocation4], 128, 128, 8
    $region13: #{tpu_custom_call.1} parent=1 // pred_fallthru
      _
    // Predicated region
    $region14: #{tpu_custom_call.1} parent=1 // pred_check
      _
    $region15: #{tpu_custom_call.1} parent=1 // pred_check_branch
      %168 = sbr.rel (0) target = $region17
    $region16: #{tpu_custom_call.1} parent=1 // pred_region
      %169 = dma.done [#allocation4], 4096
    $region17: #{tpu_custom_call.1} parent=1 // pred_fallthru
      _
    %170 = vsyncpa [#allocation3], 1
    %171 = vsyncpa [#allocation4], 1

</llo_original>
